<compile_context>
chip_gen: v7x
topology: tpu7x:2x2x1
jax: 0.10.0
libtpu: 0.0.40
codegen_flags: <defaults>
</compile_context>

<pallas_src>
import functools

import jax
import jax.numpy as jnp
import numpy as np
from jax.experimental import pallas as pl
from jax.experimental.pallas import tpu as pltpu


def _round_up(x, m):
    return (x + m - 1) // m * m


def _conv1d_subsample_kernel(x_ref, w_ref, b_ref, g_ref, beta_ref, o_ref, *, eps):
    """One (batch, time-tile) block per grid step.

    x_ref:    (1, t_tile, K_pad)  im2col conv patches (bf16)
    w_ref:    (K_pad, D)          folded conv weight (bf16)
    b_ref:    (1, D)              conv bias (f32)
    g_ref:    (1, D)              LayerNorm gamma (f32)
    beta_ref: (1, D)              LayerNorm beta  (f32)
    o_ref:    (1, t_tile, D)      output tile
    """
    d_model = o_ref.shape[-1]

    # Single MXU matmul with all conv taps folded into K; f32 accumulation.
    y = jnp.dot(x_ref[0], w_ref[...], preferred_element_type=jnp.float32)
    y = y + b_ref[...]                                   # (t_tile, D) + (1, D)

    # Fused single-pass LayerNorm over d_model (one sum + one sum-of-squares).
    inv_d = 1.0 / d_model
    mean = jnp.sum(y, axis=-1, keepdims=True) * inv_d
    var = jnp.sum(y * y, axis=-1, keepdims=True) * inv_d - mean * mean
    inv = jax.lax.rsqrt(var + eps)
    o_ref[0] = ((y - mean) * inv * g_ref[...] + beta_ref[...]).astype(o_ref.dtype)


def conv1d_subsample(feats, feat_lengths, weight, bias, gamma, beta, *,
                     w_context, subsample, eps=1e-5,
                     t_tile=256, mxu_dtype=jnp.bfloat16):
    """feats: (B, T, C_in) channel-last; weight: (w_context, C_in, d_model).

    Returns (out, out_lengths) with out: (B, T_out, d_model).
    """
    B, T, C_in = feats.shape
    d_model = weight.shape[-1]
    t_out = (T - w_context) // subsample + 1

    # ---- im2col tap folding in the wrapper (layout plumbing, like the torch permutes) ----
    limit = (t_out - 1) * subsample + 1
    cols = [
        jax.lax.slice(feats, (0, k, 0), (B, k + limit, C_in), (1, subsample, 1))
        for k in range(w_context)
    ]
    x_col = jnp.concatenate(cols, axis=-1)               # (B, t_out, w_context*C_in)
    w_fold = weight.reshape(w_context * C_in, d_model)   # tap-major rows match concat order

    # ---- pad K to 128 lanes; pad / tile the time dimension (multiple of 8) ----
    K = w_context * C_in
    K_pad = _round_up(K, 128)
    t_tile = _round_up(min(t_tile, _round_up(t_out, 8)), 8)
    t_pad = _round_up(t_out, t_tile)
    x_col = jnp.pad(x_col, ((0, 0), (0, t_pad - t_out), (0, K_pad - K)))
    w_fold = jnp.pad(w_fold, ((0, K_pad - K), (0, 0)))

    # bf16 MXU operands, f32 epilogue params.
    x_col = x_col.astype(mxu_dtype)
    w_fold = w_fold.astype(mxu_dtype)
    bias2d = bias.reshape(1, d_model).astype(jnp.float32)
    gamma2d = gamma.reshape(1, d_model).astype(jnp.float32)
    beta2d = beta.reshape(1, d_model).astype(jnp.float32)

    kernel = functools.partial(_conv1d_subsample_kernel, eps=eps)
    grid = (B, t_pad // t_tile)

    out = pl.pallas_call(
        kernel,
        out_shape=jax.ShapeDtypeStruct((B, t_pad, d_model), feats.dtype),
        grid=grid,
        in_specs=[
            pl.BlockSpec((1, t_tile, K_pad), lambda b, t: (b, t, 0)),
            # constant blocks: fetched once, revisited across the whole grid
            pl.BlockSpec((K_pad, d_model), lambda b, t: (0, 0)),
            pl.BlockSpec((1, d_model), lambda b, t: (0, 0)),
            pl.BlockSpec((1, d_model), lambda b, t: (0, 0)),
            pl.BlockSpec((1, d_model), lambda b, t: (0, 0)),
        ],
        out_specs=pl.BlockSpec((1, t_tile, d_model), lambda b, t: (b, t, 0)),
        compiler_params=pltpu.CompilerParams(
            dimension_semantics=("parallel", "parallel")),
    )(x_col, w_fold, bias2d, gamma2d, beta2d)
    out = out[:, :t_out, :]

    # Integer length update (== torch's float-div + .long() truncation for valid lengths).
    out_lengths = (feat_lengths.astype(jnp.int32)
                   - (w_context - 1) - 1) // subsample + 1
    return out, out_lengths


def _reference(feats, feat_lengths, weight, bias, gamma, beta, *,
               w_context, subsample, eps=1e-5):
    """Pure-JAX f32 reference mirroring the PyTorch module."""
    conv = jax.lax.conv_general_dilated(
        feats, weight, window_strides=(subsample,), padding="VALID",
        dimension_numbers=("NWC", "WIO", "NWC"))
    y = conv + bias[None, None, :]
    mean = y.mean(-1, keepdims=True)
    var = ((y - mean) ** 2).mean(-1, keepdims=True)
    y = (y - mean) / jnp.sqrt(var + eps)
    y = y * gamma[None, None, :] + beta[None, None, :]
    out_lengths = ((feat_lengths.astype(jnp.float32) - (w_context - 1) - 1)
                   / subsample + 1).astype(jnp.int32)
    return y, out_lengths


if __name__ == "__main__":
    # Small shapes consistent with the module's forward.
    B, T, d_input, d_model = 2, 16, 8, 16
    w_context, subsample = 3, 2

    key = jax.random.PRNGKey(0)
    k_x, k_w, k_b = jax.random.split(key, 3)

    feats = jax.random.normal(k_x, (B, T, d_input), dtype=jnp.float32)
    feat_lengths = jnp.array([16, 12], dtype=jnp.int32)

    # Deterministic parameter init (PyTorch-style uniform +/- 1/sqrt(fan_in)).
    fan_in = d_input * w_context
    bound = 1.0 / np.sqrt(fan_in)
    weight = jax.random.uniform(k_w, (w_context, d_input, d_model),
                                minval=-bound, maxval=bound, dtype=jnp.float32)
    bias = jax.random.uniform(k_b, (d_model,), minval=-bound, maxval=bound,
                              dtype=jnp.float32)
    gamma = jnp.ones((d_model,), jnp.float32)   # LayerNorm weight
    beta = jnp.zeros((d_model,), jnp.float32)   # LayerNorm bias

    out, out_lens = conv1d_subsample(feats, feat_lengths, weight, bias, gamma,
                                     beta, w_context=w_context,
                                     subsample=subsample)
    out = jax.block_until_ready(out)
    out_lens = jax.block_until_ready(out_lens)

    ref_out, ref_lens = _reference(feats, feat_lengths, weight, bias, gamma,
                                   beta, w_context=w_context,
                                   subsample=subsample)

    # bf16 MXU operands vs. f32 reference -> a couple of percent tolerance.
    np.testing.assert_allclose(np.asarray(out), np.asarray(ref_out),
                               rtol=2e-2, atol=2e-2)
    np.testing.assert_array_equal(np.asarray(out_lens), np.asarray(ref_lens))

    print("KERNEL_OK")
</pallas_src>

<mosaic_0001>
module attributes {stable_mosaic.version = 11 : i64} {
  func.func @_conv1d_subsample_kernel(%arg0: i32, %arg1: i32, %arg2: memref<1x8x128xbf16, #tpu.memory_space<vmem>>, %arg3: memref<128x16xbf16, #tpu.memory_space<vmem>>, %arg4: memref<1x16xf32, #tpu.memory_space<vmem>>, %arg5: memref<1x16xf32, #tpu.memory_space<vmem>>, %arg6: memref<1x16xf32, #tpu.memory_space<vmem>>, %arg7: memref<1x8x16xf32, #tpu.memory_space<vmem>>) attributes {dimension_semantics = [#tpu.dimension_semantics<parallel>, #tpu.dimension_semantics<parallel>], iteration_bounds = array<i64: 2, 1>, scalar_prefetch = 0 : i64, scratch_operands = 0 : i64, tpu.core_type = #tpu.core_type<tc>, window_params = [{transform_indices = @transform_0, window_bounds = array<i64: 1, 8, 128>}, {pipeline_mode = #tpu.pipeline_mode<synchronous>, transform_indices = @transform_1, window_bounds = array<i64: 128, 16>}, {pipeline_mode = #tpu.pipeline_mode<synchronous>, transform_indices = @transform_2, window_bounds = array<i64: 1, 16>}, {pipeline_mode = #tpu.pipeline_mode<synchronous>, transform_indices = @transform_3, window_bounds = array<i64: 1, 16>}, {pipeline_mode = #tpu.pipeline_mode<synchronous>, transform_indices = @transform_4, window_bounds = array<i64: 1, 16>}, {transform_indices = @transform_5, window_bounds = array<i64: 1, 8, 16>}]} {
    %c0 = arith.constant 0 : index
    %c0_0 = arith.constant 0 : index
    %c0_1 = arith.constant 0 : index
    %0 = vector.load %arg2[%c0, %c0_0, %c0_1] : memref<1x8x128xbf16, #tpu.memory_space<vmem>>, vector<1x8x128xbf16>
    %1 = vector.shape_cast %0 : vector<1x8x128xbf16> to vector<8x128xbf16>
    %c0_2 = arith.constant 0 : index
    %c0_3 = arith.constant 0 : index
    %2 = vector.load %arg3[%c0_2, %c0_3] : memref<128x16xbf16, #tpu.memory_space<vmem>>, vector<128x16xbf16>
    %cst = arith.constant dense<0.000000e+00> : vector<8x16xf32>
    %3 = tpu.matmul %1, %2, %cst {dimension_numbers = #tpu.dot_dimension_numbers<[1], [0], [0], [1], [0, 0, 1, 1], [], []>} : vector<8x128xbf16>, vector<128x16xbf16>, vector<8x16xf32> -> vector<8x16xf32>
    %c0_4 = arith.constant 0 : index
    %c0_5 = arith.constant 0 : index
    %4 = vector.load %arg4[%c0_4, %c0_5] : memref<1x16xf32, #tpu.memory_space<vmem>>, vector<1x16xf32>
    %5 = vector.broadcast %4 : vector<1x16xf32> to vector<8x16xf32>
    %6 = arith.addf %3, %5 : vector<8x16xf32>
    %cst_6 = arith.constant dense<0.000000e+00> : vector<8xf32>
    %7 = vector.multi_reduction <add>, %6, %cst_6 [1] : vector<8x16xf32> to vector<8xf32>
    %8 = vector.shape_cast %7 : vector<8xf32> to vector<8x1xf32>
    %cst_7 = arith.constant 6.250000e-02 : f32
    %9 = vector.broadcast %cst_7 : f32 to vector<8x1xf32>
    %10 = arith.mulf %8, %9 : vector<8x1xf32>
    %11 = arith.mulf %6, %6 : vector<8x16xf32>
    %cst_8 = arith.constant dense<0.000000e+00> : vector<8xf32>
    %12 = vector.multi_reduction <add>, %11, %cst_8 [1] : vector<8x16xf32> to vector<8xf32>
    %13 = vector.shape_cast %12 : vector<8xf32> to vector<8x1xf32>
    %cst_9 = arith.constant 6.250000e-02 : f32
    %14 = vector.broadcast %cst_9 : f32 to vector<8x1xf32>
    %15 = arith.mulf %13, %14 : vector<8x1xf32>
    %16 = arith.mulf %10, %10 : vector<8x1xf32>
    %17 = arith.subf %15, %16 : vector<8x1xf32>
    %cst_10 = arith.constant 9.99999974E-6 : f32
    %18 = vector.broadcast %cst_10 : f32 to vector<8x1xf32>
    %19 = arith.addf %17, %18 : vector<8x1xf32>
    %20 = math.rsqrt %19 : vector<8x1xf32>
    %21 = vector.broadcast %10 : vector<8x1xf32> to vector<8x16xf32>
    %22 = arith.subf %6, %21 : vector<8x16xf32>
    %23 = vector.broadcast %20 : vector<8x1xf32> to vector<8x16xf32>
    %24 = arith.mulf %22, %23 : vector<8x16xf32>
    %c0_11 = arith.constant 0 : index
    %c0_12 = arith.constant 0 : index
    %25 = vector.load %arg5[%c0_11, %c0_12] : memref<1x16xf32, #tpu.memory_space<vmem>>, vector<1x16xf32>
    %26 = vector.broadcast %25 : vector<1x16xf32> to vector<8x16xf32>
    %27 = arith.mulf %24, %26 : vector<8x16xf32>
    %c0_13 = arith.constant 0 : index
    %c0_14 = arith.constant 0 : index
    %28 = vector.load %arg6[%c0_13, %c0_14] : memref<1x16xf32, #tpu.memory_space<vmem>>, vector<1x16xf32>
    %29 = vector.broadcast %28 : vector<1x16xf32> to vector<8x16xf32>
    %30 = arith.addf %27, %29 : vector<8x16xf32>
    %c0_15 = arith.constant 0 : index
    %c0_16 = arith.constant 0 : index
    %c0_17 = arith.constant 0 : index
    %31 = vector.load %arg7[%c0_15, %c0_16, %c0_17] : memref<1x8x16xf32, #tpu.memory_space<vmem>>, vector<1x8x16xf32>
    %32 = vector.shape_cast %31 : vector<1x8x16xf32> to vector<8x16xf32>
    %33 = vector.shape_cast %30 : vector<8x16xf32> to vector<1x8x16xf32>
    tpu.vector_store %arg7[%c0_15, %c0_16, %c0_17], %33 {strides = array<i32>} : memref<1x8x16xf32, #tpu.memory_space<vmem>>, vector<1x8x16xf32>,
    return
  }
  func.func @transform_0(%arg0: i32, %arg1: i32) -> (i32, i32, i32) {
    %c0_i32 = arith.constant 0 : i32
    %c0_i32_0 = arith.constant 0 : i32
    return %arg0, %arg1, %c0_i32 : i32, i32, i32
  }
  func.func @transform_1(%arg0: i32, %arg1: i32) -> (i32, i32) {
    %c0_i32 = arith.constant 0 : i32
    %c0_i32_0 = arith.constant 0 : i32
    %c0_i32_1 = arith.constant 0 : i32
    return %c0_i32, %c0_i32_0 : i32, i32
  }
  func.func @transform_2(%arg0: i32, %arg1: i32) -> (i32, i32) {
    %c0_i32 = arith.constant 0 : i32
    %c0_i32_0 = arith.constant 0 : i32
    %c0_i32_1 = arith.constant 0 : i32
    return %c0_i32, %c0_i32_0 : i32, i32
  }
  func.func @transform_3(%arg0: i32, %arg1: i32) -> (i32, i32) {
    %c0_i32 = arith.constant 0 : i32
    %c0_i32_0 = arith.constant 0 : i32
    %c0_i32_1 = arith.constant 0 : i32
    return %c0_i32, %c0_i32_0 : i32, i32
  }
  func.func @transform_4(%arg0: i32, %arg1: i32) -> (i32, i32) {
    %c0_i32 = arith.constant 0 : i32
    %c0_i32_0 = arith.constant 0 : i32
    %c0_i32_1 = arith.constant 0 : i32
    return %c0_i32, %c0_i32_0 : i32, i32
  }
  func.func @transform_5(%arg0: i32, %arg1: i32) -> (i32, i32, i32) {
    %c0_i32 = arith.constant 0 : i32
    %c0_i32_0 = arith.constant 0 : i32
    return %arg0, %arg1, %c0_i32 : i32, i32, i32
  }
}

</mosaic_0001>

<llo_original>
// kernel: tpu_custom_call.1
$region0: #{tpu_custom_call.1}
  #allocation0 [shape = 'u32[]', space=smem, size = 0x4, offset = 0x4, fixed_abs, tag = 'smem constant byte address 0x4 - core index']
  #allocation1 [shape = 'u32[144,128]{1,0:T(1,128)}', space=vmem, size = 0x12000, scoped, tag = 'internal scratch']
  %s0 = inlined_call_operand.vmem [shape: bf16[2,8,128], index: 0, kind: input, shape index: {}]
  %s1 = inlined_call_operand.vmem [shape: bf16[128,16], index: 1, kind: input, shape index: {}]
  %s2 = inlined_call_operand.vmem [shape: f32[1,16], index: 2, kind: input, shape index: {}]
  %s3 = inlined_call_operand.vmem [shape: f32[1,16], index: 3, kind: input, shape index: {}]
  %s4 = inlined_call_operand.vmem [shape: f32[1,16], index: 4, kind: input, shape index: {}]
  %s5 = inlined_call_operand.hbm [shape: f32[2,8,16], index: 5, kind: output, shape index: {}]
  %s6 = sld [smem:[#allocation0]]
  $region53: #{tpu_custom_call.1} parent=0
    _
  %s8 = ssub.s32 1, %s6
  %s9 = scalar_select 0, %s8, %s6
  $region1: #{tpu_custom_call.1} parent=0
    #allocation2 [shape = 'u8[8192]{0}', space=vmem, size = 0x2000, scoped, tag = 'output window, operand 0']
    #allocation3 [shape = 's32[2]{0}', space=sflag, size = 0x8, scoped, tag = 'scoped memory for tpu_custom_call.1']
    %10 = vsyncpa [#allocation3], 0
    %s11 = scalar_lea.sflag [#allocation3], 1
    %12 = vsyncpa %s11, 0
    loop: start=0, step=1, limit=4
    $region2: #{tpu_custom_call.1} parent=1 // loop_pre_header
      _
    $region3: #{tpu_custom_call.1} parent=1 // loop_header
      %s14 = sphi 0, %s18
      %p15 = scmp.ge.s32.totalorder %s14, 4
      %s21 = sphi 0, %s33
      %s22 = sphi 0, %s29
      %s23 = sphi 0, %s21
      %s24 = sphi 0, %s22
      %s25 = sphi 0, %s23
      %s26 = sphi 0, %s24
      %s38 = sphi 0, %s40
      %s41 = sphi 0, %s38
      %s42 = sphi 0, %s41
      %s58 = sphi 0, %s42
      %s62 = sphi 0, %s62
      %s64 = sphi 0, %s62
      %s65 = sphi 0, %s64
      %s79 = sphi 0, %s65
      %s83 = sphi 0, %s83
      %s85 = sphi 0, %s83
      %s86 = sphi 0, %s85
      %s100 = sphi 0, %s86
      %s104 = sphi 0, %s104
      %s106 = sphi 0, %s104
      %s107 = sphi 0, %s106
      %s121 = sphi 0, %s107
      %s125 = sphi 0, %s125
      %s127 = sphi 0, %s125
      %s128 = sphi 0, %s127
      %s142 = sphi 0, %s128
      %s150 = sphi 0, %s152
      %s153 = sphi 0, %s150
      %s154 = sphi 0, %s153
      %s170 = sphi 0, %s154
    $region4: #{tpu_custom_call.1} parent=1 // loop_header_branch
      %17 = sbr.rel (%p15) target = $region8
    $region5: #{tpu_custom_call.1} parent=1 // loop_body
      %s19 = ssub.s32 %s14, 1
      %s20 = ssub.s32 %s14, 2
      %s27 = sadd.s32 1, %s22
      %p28 = scmp.ge.s32.totalorder %s27, 1
      %s29 = scalar_select %p28, 0, %s27
      %s30 = sadd.s32 1, %s21
      %s31 = scalar_select %p28, %s30, %s21
      %p32 = scmp.ge.s32.totalorder %s31, 2
      %s33 = scalar_select %p32, 0, %s31
      %s34 = ssub.s32 %s21, %s33
      %s35 = ssub.s32 %s22, %s29
      %s36 = sor.u32 %s34, %s35
      %p37 = scmp.eq.s32.totalorder %s36, 0
      %s39 = sadd.s32 %s38, 1
      %s40 = scalar_select %p37, %s38, %s39
      %p43 = pneg %p37
      %p44 = scmp.eq.s32.totalorder %s14, 1
      %p45 = por %p43, %p44
      %p46 = scmp.ne.s32.totalorder %s38, %s41
      %p47 = scmp.eq.s32.totalorder %s14, 0
      %p48 = por %p46, %p47
      %p49 = scmp.ne.s32.totalorder %s38, %s41
      %p50 = scmp.eq.s32.totalorder %s19, 1
      %p51 = por %p49, %p50
      %p52 = scmp.ne.s32.totalorder %s41, %s42
      %p53 = scmp.eq.s32.totalorder %s19, 0
      %p54 = por %p52, %p53
      %p55 = scmp.ne.s32.totalorder %s41, %s42
      %p56 = scmp.eq.s32.totalorder %s20, 1
      %p57 = por %p55, %p56
      %p59 = scmp.ne.s32.totalorder %s42, %s58
      %p60 = scmp.eq.s32.totalorder %s20, 0
      %p61 = por %p59, %p60
      %s63 = sadd.s32 %s62, 1
      %p66 = scmp.eq.s32.totalorder %s14, 1
      %p67 = scmp.ne.s32.totalorder %s62, %s64
      %p68 = scmp.eq.s32.totalorder %s14, 0
      %p69 = por %p67, %p68
      %p70 = scmp.ne.s32.totalorder %s62, %s64
      %p71 = scmp.eq.s32.totalorder %s19, 1
      %p72 = por %p70, %p71
      %p73 = scmp.ne.s32.totalorder %s64, %s65
      %p74 = scmp.eq.s32.totalorder %s19, 0
      %p75 = por %p73, %p74
      %p76 = scmp.ne.s32.totalorder %s64, %s65
      %p77 = scmp.eq.s32.totalorder %s20, 1
      %p78 = por %p76, %p77
      %p80 = scmp.ne.s32.totalorder %s65, %s79
      %p81 = scmp.eq.s32.totalorder %s20, 0
      %p82 = por %p80, %p81
      %s84 = sadd.s32 %s83, 1
      %p87 = scmp.eq.s32.totalorder %s14, 1
      %p88 = scmp.ne.s32.totalorder %s83, %s85
      %p89 = scmp.eq.s32.totalorder %s14, 0
      %p90 = por %p88, %p89
      %p91 = scmp.ne.s32.totalorder %s83, %s85
      %p92 = scmp.eq.s32.totalorder %s19, 1
      %p93 = por %p91, %p92
      %p94 = scmp.ne.s32.totalorder %s85, %s86
      %p95 = scmp.eq.s32.totalorder %s19, 0
      %p96 = por %p94, %p95
      %p97 = scmp.ne.s32.totalorder %s85, %s86
      %p98 = scmp.eq.s32.totalorder %s20, 1
      %p99 = por %p97, %p98
      %p101 = scmp.ne.s32.totalorder %s86, %s100
      %p102 = scmp.eq.s32.totalorder %s20, 0
      %p103 = por %p101, %p102
      %s105 = sadd.s32 %s104, 1
      %p108 = scmp.eq.s32.totalorder %s14, 1
      %p109 = scmp.ne.s32.totalorder %s104, %s106
      %p110 = scmp.eq.s32.totalorder %s14, 0
      %p111 = por %p109, %p110
      %p112 = scmp.ne.s32.totalorder %s104, %s106
      %p113 = scmp.eq.s32.totalorder %s19, 1
      %p114 = por %p112, %p113
      %p115 = scmp.ne.s32.totalorder %s106, %s107
      %p116 = scmp.eq.s32.totalorder %s19, 0
      %p117 = por %p115, %p116
      %p118 = scmp.ne.s32.totalorder %s106, %s107
      %p119 = scmp.eq.s32.totalorder %s20, 1
      %p120 = por %p118, %p119
      %p122 = scmp.ne.s32.totalorder %s107, %s121
      %p123 = scmp.eq.s32.totalorder %s20, 0
      %p124 = por %p122, %p123
      %s126 = sadd.s32 %s125, 1
      %p129 = scmp.eq.s32.totalorder %s14, 1
      %p130 = scmp.ne.s32.totalorder %s125, %s127
      %p131 = scmp.eq.s32.totalorder %s14, 0
      %p132 = por %p130, %p131
      %p133 = scmp.ne.s32.totalorder %s125, %s127
      %p134 = scmp.eq.s32.totalorder %s19, 1
      %p135 = por %p133, %p134
      %p136 = scmp.ne.s32.totalorder %s127, %s128
      %p137 = scmp.eq.s32.totalorder %s19, 0
      %p138 = por %p136, %p137
      %p139 = scmp.ne.s32.totalorder %s127, %s128
      %p140 = scmp.eq.s32.totalorder %s20, 1
      %p141 = por %p139, %p140
      %p143 = scmp.ne.s32.totalorder %s128, %s142
      %p144 = scmp.eq.s32.totalorder %s20, 0
      %p145 = por %p143, %p144
      %s146 = ssub.s32 %s21, %s33
      %s147 = ssub.s32 %s22, %s29
      %s148 = sor.u32 %s146, %s147
      %p149 = scmp.eq.s32.totalorder %s148, 0
      %s151 = sadd.s32 %s150, 1
      %s152 = scalar_select %p149, %s150, %s151
      %p155 = pneg %p149
      %p156 = scmp.eq.s32.totalorder %s14, 1
      %p157 = por %p155, %p156
      %p158 = scmp.ne.s32.totalorder %s150, %s153
      %p159 = scmp.eq.s32.totalorder %s14, 0
      %p160 = por %p158, %p159
      %p161 = scmp.ne.s32.totalorder %s150, %s153
      %p162 = scmp.eq.s32.totalorder %s19, 1
      %p163 = por %p161, %p162
      %p164 = scmp.ne.s32.totalorder %s153, %s154
      %p165 = scmp.eq.s32.totalorder %s19, 0
      %p166 = por %p164, %p165
      %p167 = scmp.ne.s32.totalorder %s153, %s154
      %p168 = scmp.eq.s32.totalorder %s20, 1
      %p169 = por %p167, %p168
      %p171 = scmp.ne.s32.totalorder %s154, %s170
      %p172 = scmp.eq.s32.totalorder %s20, 0
      %p173 = por %p171, %p172
      %p174 = scmp.le.s32.totalorder 1, %s14
      %p175 = scmp.lt.s32.totalorder %s14, 3
      %p176 = pnand %p174, %p175
      %p177 = pneg %p176
      // Predicated region
      $region9: #{tpu_custom_call.1} parent=5 // pred_check
        _
      $region10: #{tpu_custom_call.1} parent=5 // pred_check_branch
        %179 = sbr.rel (%p176) target = $region12
      $region11: #{tpu_custom_call.1} parent=5 // pred_region
        %s180 = ssub.s32 %s14, 1
        // Predicated region
        $region13: #{tpu_custom_call.1} parent=11 // pred_check
          %p181 = pneg %p75
        $region14: #{tpu_custom_call.1} parent=11 // pred_check_branch
          %183 = sbr.rel (%p181) target = $region16
        $region15: #{tpu_custom_call.1} parent=11 // pred_region
          _
        $region16: #{tpu_custom_call.1} parent=11 // pred_fallthru
          _
        // Predicated region
        $region17: #{tpu_custom_call.1} parent=11 // pred_check
          %p184 = pneg %p96
        $region18: #{tpu_custom_call.1} parent=11 // pred_check_branch
          %186 = sbr.rel (%p184) target = $region20
        $region19: #{tpu_custom_call.1} parent=11 // pred_region
          _
        $region20: #{tpu_custom_call.1} parent=11 // pred_fallthru
          _
        // Predicated region
        $region21: #{tpu_custom_call.1} parent=11 // pred_check
          %p187 = pneg %p117
        $region22: #{tpu_custom_call.1} parent=11 // pred_check_branch
          %189 = sbr.rel (%p187) target = $region24
        $region23: #{tpu_custom_call.1} parent=11 // pred_region
          _
        $region24: #{tpu_custom_call.1} parent=11 // pred_fallthru
          _
        // Predicated region
        $region25: #{tpu_custom_call.1} parent=11 // pred_check
          %p190 = pneg %p138
        $region26: #{tpu_custom_call.1} parent=11 // pred_check_branch
          %192 = sbr.rel (%p190) target = $region28
        $region27: #{tpu_custom_call.1} parent=11 // pred_region
          _
        $region28: #{tpu_custom_call.1} parent=11 // pred_fallthru
          _
      $region12: #{tpu_custom_call.1} parent=5 // pred_fallthru
        _
      %p193 = scmp.lt.s32.totalorder %s14, 2
      // Predicated region
      $region29: #{tpu_custom_call.1} parent=5 // pred_check
        %p194 = pneg %p193
      $region30: #{tpu_custom_call.1} parent=5 // pred_check_branch
        %196 = sbr.rel (%p194) target = $region32
      $region31: #{tpu_custom_call.1} parent=5 // pred_region
        // Predicated region
        $region33: #{tpu_custom_call.1} parent=31 // pred_check
          %p197 = pneg %p48
        $region34: #{tpu_custom_call.1} parent=31 // pred_check_branch
          %199 = sbr.rel (%p197) target = $region36
        $region35: #{tpu_custom_call.1} parent=31 // pred_region
          %p200 = scmp.lt.s32.totalorder %s21, 1
          %s201 = scalar_select %p200, %s21, 1
          %p202 = scmp.lt.s32.totalorder %s22, 0
          %s203 = scalar_select %p202, %s22, 0
          %s204 = sadd.s32 %s203, %s201
          %s205 = smul.addr %s204, 4
          %s206 = scalar_lea.vmem %s0, %s205
        $region36: #{tpu_custom_call.1} parent=31 // pred_fallthru
          _
      $region32: #{tpu_custom_call.1} parent=5 // pred_fallthru
        _
      %p207 = scmp.le.s32.totalorder 1, %s14
      %p208 = scmp.lt.s32.totalorder %s14, 3
      %p209 = pnand %p207, %p208
      %p210 = pneg %p209
      // Predicated region
      $region37: #{tpu_custom_call.1} parent=5 // pred_check
        _
      $region38: #{tpu_custom_call.1} parent=5 // pred_check_branch
        %212 = sbr.rel (%p209) target = $region40
      $region39: #{tpu_custom_call.1} parent=5 // pred_region
        %s213 = ssub.s32 %s14, 1
        %p214 = scmp.lt.s32.totalorder %s23, 1
        %s215 = scalar_select %p214, %s23, 1
        %p216 = scmp.lt.s32.totalorder %s24, 0
        %s217 = scalar_select %p216, %s24, 0
        %s218 = sadd.s32 %s217, %s215
        %s219 = smul.addr %s218, 4
        %s220 = scalar_lea.vmem %s0, %s219
        %p221 = pneg %p54
        %p222 = pneg %p51
        %p223 = pneg %p75
        %p224 = pneg %p72
        %p225 = pneg %p96
        %p226 = pneg %p93
        %p227 = pneg %p117
        %p228 = pneg %p114
        %p229 = pneg %p138
        %p230 = pneg %p135
        %p231 = pneg %p166
        %p232 = pneg %p163
        %s233 = sand.u32 %s153, 1
        %s234 = scalar_lea.sflag [#allocation3], %s233
        %s235 = sand.u32 %s153, 1
        %s236 = smul.addr %s235, 8
        %s237 = scalar_lea.vmem [#allocation2], %s236
        %p238 = scmp.lt.s32.totalorder %s23, 1
        %s239 = scalar_select %p238, %s23, 1
        %p240 = scmp.lt.s32.totalorder %s24, 0
        %s241 = scalar_select %p240, %s24, 0
        %s242 = sadd.s32 %s241, %s239
        %s243 = smul.addr %s242, 4
        %s244 = scalar_lea.vmem %s0, %s243
        %v246 = vld [vmem:[%s244] sm:$0xf]
        %v247 = vld [vmem:[%s1] sm:$0xf]
        %v248 = vld [vmem:[%s1 + $0x4] sm:$0xf]
        %v249 = vld [vmem:[%s1 + $0x8] sm:$0xf]
        %v250 = vld [vmem:[%s1 + $0xc] sm:$0xf]
        %v251 = vld [vmem:[%s1 + $0x10] sm:$0xf]
        %v252 = vld [vmem:[%s1 + $0x14] sm:$0xf]
        %v253 = vld [vmem:[%s1 + $0x18] sm:$0xf]
        %v254 = vld [vmem:[%s1 + $0x1c] sm:$0xf]
        %v255 = vld [vmem:[%s1 + $0x20] sm:$0xf]
        %v256 = vld [vmem:[%s1 + $0x24] sm:$0xf]
        %v257 = vld [vmem:[%s1 + $0x28] sm:$0xf]
        %v258 = vld [vmem:[%s1 + $0x2c] sm:$0xf]
        %v259 = vld [vmem:[%s1 + $0x30] sm:$0xf]
        %v260 = vld [vmem:[%s1 + $0x34] sm:$0xf]
        %v261 = vld [vmem:[%s1 + $0x38] sm:$0xf]
        %v262 = vld [vmem:[%s1 + $0x3c] sm:$0xf]
        %v263 = vld [vmem:[%s2] sm:$0x1]
        %v265 = vlaneseq
        %v266 = vshrl.u32 %v265, 7
        %v267 = vsub.s32 0, %v266
        %v268 = vrot.slane %v263, %v267
        %v286 = vunpack.c.l.b16 %v247
        %v287 = vunpack.c.l.b16 %v248
        %v288 = vunpack.c.l.b16 %v249
        %v289 = vunpack.c.l.b16 %v250
        %v290 = vunpack.c.l.b16 %v251
        %v291 = vunpack.c.l.b16 %v252
        %v292 = vunpack.c.l.b16 %v253
        %v293 = vunpack.c.l.b16 %v254
        %v294 = vunpack.c.l.b16 %v255
        %v295 = vunpack.c.l.b16 %v256
        %v296 = vunpack.c.l.b16 %v257
        %v297 = vunpack.c.l.b16 %v258
        %v298 = vunpack.c.l.b16 %v259
        %v299 = vunpack.c.l.b16 %v260
        %v300 = vunpack.c.l.b16 %v261
        %v301 = vunpack.c.l.b16 %v262
        %v302 = vpack.c.b16 %v287, %v286
        %v303 = vpack.c.b16 %v289, %v288
        %v304 = vpack.c.b16 %v291, %v290
        %v305 = vpack.c.b16 %v293, %v292
        %v306 = vpack.c.b16 %v295, %v294
        %v307 = vpack.c.b16 %v297, %v296
        %v308 = vpack.c.b16 %v299, %v298
        %v309 = vpack.c.b16 %v301, %v300
        %318 = vmatprep.subr.bf16.mxu0 0
        %319 = vmatpush1.bf16.msra.mxu0 %v302
        %320 = vmatprep.subr.bf16.mxu0 0
        %321 = vmatpush1.bf16.msra.mxu0 %v303
        %322 = vmatprep.subr.bf16.mxu0 0
        %323 = vmatpush1.bf16.msra.mxu0 %v304
        %324 = vmatprep.subr.bf16.mxu0 0
        %325 = vmatpush1.bf16.msra.mxu0 %v305
        %326 = vmatprep.subr.bf16.mxu0 0
        %327 = vmatpush1.bf16.msra.mxu0 %v306
        %328 = vmatprep.subr.bf16.mxu0 0
        %329 = vmatpush1.bf16.msra.mxu0 %v307
        %330 = vmatprep.subr.bf16.mxu0 0
        %331 = vmatpush1.bf16.msra.mxu0 %v308
        %332 = vmatprep.subr.bf16.mxu0 0
        %333 = vmatpush1.bf16.msra.mxu0 %v309
        %334 = vmatprep.subr.bf16.mxu0 0
        %335 = vmatpush1.bf16.msra.mxu0 0
        %336 = vmatprep.subr.bf16.mxu0 0
        %337 = vmatpush1.bf16.msra.mxu0 0
        %338 = vmatprep.subr.bf16.mxu0 0
        %339 = vmatpush1.bf16.msra.mxu0 0
        %340 = vmatprep.subr.bf16.mxu0 0
        %341 = vmatpush1.bf16.msra.mxu0 0
        %342 = vmatprep.subr.bf16.mxu0 0
        %343 = vmatpush1.bf16.msra.mxu0 0
        %344 = vmatprep.subr.bf16.mxu0 0
        %345 = vmatpush1.bf16.msra.mxu0 0
        %346 = vmatprep.subr.bf16.mxu0 0
        %347 = vmatpush1.bf16.msra.mxu0 0
        %348 = vmatprep.subr.bf16.mxu0 0
        %349 = vmatpush1.bf16.msra.mxu0 0
        %350 = vmatprep.mubr.bf16.mxu0 0
        %351 = vmatmul.mubr.bf16.gmra.mrb[0].mxu0 %v246
        %v352 = vpop.f32.mrb[0].mxu0
        %v353 = vadd.f32 %v268, %v352
        %v354 = vpop.f32.mrb[0].mxu0
        %v355 = vpop.f32.mrb[0].mxu0
        %v356 = vpop.f32.mrb[0].mxu0
        %357 = vdwg.mxu0
        %vm358 = vcmask 130048
        %v359 = vsel %vm358, %v353, 0.0
        %360 = vadd.xlane.f32.xlu0 %v359
        %v361 = vpop.xlane.xlu0 %360
        %v362 = vmul.f32 %v361, 0.0625
        %v363 = vmul.f32 %v353, %v353
        %v364 = vsel %vm358, %v363, 0.0
        %365 = vadd.xlane.f32.xlu0 %v364
        %v366 = vpop.xlane.xlu0 %365
        %v367 = vmul.f32 %v366, 0.0625
        %v368 = vmul.f32 %v362, %v362
        %v369 = vsub.f32 %v367, %v368
        %v370 = vadd.f32 %v369, 1e-05
        %v371 = vrsqrt.pop %v370
        %v372 = vsub.f32 %v353, %v362
        %v373 = vmul.f32 %v372, %v371
        %v374 = vld [vmem:[%s3] sm:$0x1]
        %v376 = vlaneseq
        %v377 = vshrl.u32 %v376, 7
        %v378 = vsub.s32 0, %v377
        %v379 = vrot.slane %v374, %v378
        %v381 = vmul.f32 %v373, %v379
        %v382 = vld [vmem:[%s4] sm:$0x1]
        %v384 = vlaneseq
        %v385 = vshrl.u32 %v384, 7
        %v386 = vsub.s32 0, %v385
        %v387 = vrot.slane %v382, %v386
        %v389 = vadd.f32 %v381, %v387
        %390 = vst.msk [vmem:[%s237] sm:$0xff] %vm358, %v389
        %s391 = sand.u32 %s153, 1
        %s392 = scalar_lea.sflag [#allocation3], %s391
        %s393 = sand.u32 %s153, 1
        %s394 = smul.addr %s393, 8
        %s395 = scalar_lea.vmem [#allocation2], %s394
        // Predicated region
        $region41: #{tpu_custom_call.1} parent=39 // pred_check
          %p396 = pneg %p163
        $region42: #{tpu_custom_call.1} parent=39 // pred_check_branch
          %398 = sbr.rel (%p396) target = $region44
        $region43: #{tpu_custom_call.1} parent=39 // pred_region
          %s400 = ssub.s32 128, 128
          %401 = vsyncadd %s392, %s400
          %s402 = sadd.s32 %s24, %s23
          %s403 = smul.addr %s402, 128
          %s404 = scalar_lea.hbm %s5, %s403
          %s406 = sshll.u32 %s395, 4
          %s407 = int_to_ptr.vmem [resolvable:$true] %s406
          %409 = dma.vmem_to_hbm [thread:$0]  %s407, 128, %s404, %s392
        $region44: #{tpu_custom_call.1} parent=39 // pred_fallthru
          _
      $region40: #{tpu_custom_call.1} parent=5 // pred_fallthru
        _
      %p410 = scmp.le.s32.totalorder 2, %s14
      // Predicated region
      $region45: #{tpu_custom_call.1} parent=5 // pred_check
        %p411 = pneg %p410
      $region46: #{tpu_custom_call.1} parent=5 // pred_check_branch
        %413 = sbr.rel (%p411) target = $region48
      $region47: #{tpu_custom_call.1} parent=5 // pred_region
        %s414 = ssub.s32 %s14, 2
        // Predicated region
        $region49: #{tpu_custom_call.1} parent=47 // pred_check
          %p415 = pneg %p169
        $region50: #{tpu_custom_call.1} parent=47 // pred_check_branch
          %417 = sbr.rel (%p415) target = $region52
        $region51: #{tpu_custom_call.1} parent=47 // pred_region
          %s418 = sand.u32 %s154, 1
          %s419 = scalar_lea.sflag [#allocation3], %s418
          %s420 = sand.u32 %s154, 1
          %s421 = smul.addr %s420, 8
          %s422 = scalar_lea.vmem [#allocation2], %s421
          %423 = dma.done %s419, 128
        $region52: #{tpu_custom_call.1} parent=47 // pred_fallthru
          _
      $region48: #{tpu_custom_call.1} parent=5 // pred_fallthru
        _
    $region6: #{tpu_custom_call.1} parent=1 // loop_footer
      %s18 = sadd.s32 1, %s14
    $region7: #{tpu_custom_call.1} parent=1 // loop_footer_branch
      %13 = sbr.rel target = $region3
    $region8: #{tpu_custom_call.1} parent=1 // loop_exit
      _
    %424 = vsyncpa [#allocation3], 1
    %s425 = scalar_lea.sflag [#allocation3], 1
    %426 = vsyncpa %s425, 1

</llo_original>
